<compile_context>
chip_gen: v6e
topology: v6e:2x2x1
jax: 0.10.0
libtpu: 0.0.40
codegen_flags: <defaults>
</compile_context>

<pallas_src>
import functools
import math

import numpy as np

import jax
import jax.numpy as jnp
from jax.experimental import pallas as pl
from jax.experimental.pallas import tpu as pltpu

# ----- PINNConfig constants (defaults from the dataclass) -----
GRAVITY = 9.81
WATER_DENSITY = 1025.0
DATA_LOSS_W = 1.0
PHYSICS_LOSS_W = 0.5
BOUNDARY_LOSS_W = 0.3
CONSERVATION_LOSS_W = 0.2

_LOSS_NAMES = (
    "data_loss",
    "wave_equation_loss",
    "energy_conservation_loss",
    "dispersion_relation_loss",
    "boundary_condition_loss",
    "total_loss",
)

# Portable VMEM budget: tiles are chosen to keep (inputs x 2 pipeline buffers +
# 6 f32 accumulators) under ~20 MiB, which leaves headroom on v7x (64 MiB
# physical / 32 MiB default scoped). The limit below also lifts the smaller
# default scoped limits on v5e (16 MiB) / v6e (32 MiB).
_VMEM_BUDGET_BYTES = 20 * 1024 * 1024
_VMEM_LIMIT_BYTES = 40 * 1024 * 1024


# --------------------------------------------------------------------------
# Small-input fast path: whole arrays as single VMEM blocks, no grid.
# --------------------------------------------------------------------------
def _pinn_small_kernel(
    pred_ref, tgt_ref, h_ref, hp_ref, cg_ref, e_ref, per_ref, k_ref,
    out_ref, *, inv_dt: float, var_scale: float,
):
    # Cast in-kernel: inputs are streamed at their native dtype.
    pred = pred_ref[...].astype(jnp.float32)
    tgt = tgt_ref[...].astype(jnp.float32)
    h = h_ref[...].astype(jnp.float32)
    hp = hp_ref[...].astype(jnp.float32)
    cg = cg_ref[...].astype(jnp.float32)
    e = e_ref[...].astype(jnp.float32)
    per = per_ref[...].astype(jnp.float32)
    k = k_ref[...].astype(jnp.float32)

    # data loss: F.mse_loss(pred, target)
    diff = pred - tgt
    data_loss = jnp.mean(diff * diff)

    # wave equation loss: the reference's spatial gradients are literal zeros,
    # so the residual is exactly dH/dt = (H - H_prev) / dt.
    dh_dt = (h - hp) * inv_dt
    wave_loss = jnp.mean(dh_dt * dh_dt)

    # energy conservation: torch.var(E * cg, dim=1).mean() (unbiased)
    flux = e * cg
    flux_mean = jnp.mean(flux, axis=1, keepdims=True)
    dev = flux - flux_mean
    flux_var = jnp.sum(dev * dev, axis=1, keepdims=True) * var_scale
    energy_loss = jnp.mean(flux_var)

    # dispersion relation: mean((omega^2 - g*k)^2), omega = 2*pi/(T + 1e-6)
    omega = (2.0 * math.pi) * pl.reciprocal(per + 1e-6, approx=False)
    disp_res = omega * omega - GRAVITY * k
    disp_loss = jnp.mean(disp_res * disp_res)

    # boundary conditions: the four relu-means share the same divisor, so they
    # fuse into a single mean of summed penalties.
    zero = jnp.zeros_like(h)
    penalty = (
        jnp.maximum(-h, zero)
        + jnp.maximum(h - 20.0, zero)
        + jnp.maximum(1.0 - per, zero)
        + jnp.maximum(per - 25.0, zero)
    )
    boundary_loss = jnp.mean(penalty)

    total = (
        DATA_LOSS_W * data_loss
        + PHYSICS_LOSS_W * wave_loss
        + CONSERVATION_LOSS_W * energy_loss
        + PHYSICS_LOSS_W * disp_loss
        + BOUNDARY_LOSS_W * boundary_loss
    )

    out_ref[0, 0] = data_loss
    out_ref[0, 1] = wave_loss
    out_ref[0, 2] = energy_loss
    out_ref[0, 3] = disp_loss
    out_ref[0, 4] = boundary_loss
    out_ref[0, 5] = total
    out_ref[0, 6] = jnp.float32(0.0)
    out_ref[0, 7] = jnp.float32(0.0)


def _pinn_loss_single_block(args, dt: float, batch: int, n: int):
    var_scale = (1.0 / (n - 1)) if n > 1 else float("nan")  # matches torch.var(N=1) -> nan
    kernel = functools.partial(
        _pinn_small_kernel, inv_dt=1.0 / dt, var_scale=var_scale
    )
    vmem = pl.BlockSpec(memory_space=pltpu.MemorySpace.VMEM)
    smem = pl.BlockSpec(memory_space=pltpu.MemorySpace.SMEM)

    bytes_accessed = sum(int(a.size) * a.dtype.itemsize for a in args) + 32
    cost = pl.CostEstimate(
        flops=int(30 * batch * n),
        transcendentals=int(batch * n),
        bytes_accessed=int(bytes_accessed),
    )

    out = pl.pallas_call(
        kernel,
        out_shape=jax.ShapeDtypeStruct((1, 8), jnp.float32),
        in_specs=[vmem] * 8,
        out_specs=smem,
        compiler_params=pltpu.CompilerParams(vmem_limit_bytes=_VMEM_LIMIT_BYTES),
        cost_estimate=cost,
    )(*args)

    return {name: out[0, i] for i, name in enumerate(_LOSS_NAMES)}


# --------------------------------------------------------------------------
# Large-input path: (core, tile) grid, streaming accumulators, late reduction.
# --------------------------------------------------------------------------
def _pinn_tiled_kernel(
    pred_ref, tgt_ref, h_ref, hp_ref, cg_ref, e_ref, per_ref, k_ref,
    part_ref,
    acc_data, acc_wave, acc_disp, acc_bnd, acc_flux, acc_flux2,
    *, inv_dt: float, tiles_per_core: int,
):
    t = pl.program_id(1)

    @pl.when(t == 0)
    def _init():
        z = jnp.zeros(acc_data.shape, jnp.float32)
        acc_data[...] = z
        acc_wave[...] = z
        acc_disp[...] = z
        acc_bnd[...] = z
        acc_flux[...] = z
        acc_flux2[...] = z

    pred = pred_ref[...].astype(jnp.float32)
    tgt = tgt_ref[...].astype(jnp.float32)
    h = h_ref[...].astype(jnp.float32)
    hp = hp_ref[...].astype(jnp.float32)
    cg = cg_ref[...].astype(jnp.float32)
    e = e_ref[...].astype(jnp.float32)
    per = per_ref[...].astype(jnp.float32)
    k = k_ref[...].astype(jnp.float32)

    # Per-element contributions accumulated in full-tile VPU accumulators;
    # cross-lane reductions are deferred to the finalize step.
    diff = pred - tgt
    acc_data[...] += diff * diff

    # spatial gradients are exactly zero in the reference -> residual == dH/dt
    dh_dt = (h - hp) * inv_dt
    acc_wave[...] += dh_dt * dh_dt

    omega = (2.0 * math.pi) * pl.reciprocal(per + 1e-6, approx=False)
    disp_res = omega * omega - GRAVITY * k
    acc_disp[...] += disp_res * disp_res

    zero = jnp.zeros_like(h)
    acc_bnd[...] += (
        jnp.maximum(-h, zero)
        + jnp.maximum(h - 20.0, zero)
        + jnp.maximum(1.0 - per, zero)
        + jnp.maximum(per - 25.0, zero)
    )

    flux = e * cg
    acc_flux[...] += flux
    acc_flux2[...] += flux * flux

    @pl.when(t == tiles_per_core - 1)
    def _finalize():
        cols = [
            jnp.sum(acc_data[...], axis=1, keepdims=True),   # sum (pred-tgt)^2
            jnp.sum(acc_wave[...], axis=1, keepdims=True),   # sum (dH/dt)^2
            jnp.sum(acc_disp[...], axis=1, keepdims=True),   # sum disp_res^2
            jnp.sum(acc_bnd[...], axis=1, keepdims=True),    # sum boundary penalty
            jnp.sum(acc_flux[...], axis=1, keepdims=True),   # per-row S1
            jnp.sum(acc_flux2[...], axis=1, keepdims=True),  # per-row S2
        ]
        packed = jnp.concatenate(cols, axis=1)               # (B, 6)
        pad = jnp.zeros((packed.shape[0], 2), jnp.float32)
        part_ref[...] = jnp.concatenate([packed, pad], axis=1)[None]  # (1, B, 8)


def _select_tile_n(batch: int, n: int, max_tile_n: int):
    # 8 inputs x 2 pipeline buffers (budgeted at 4B/elem) + 6 f32 accumulators.
    for cand in (4096, 2048, 1024, 512, 256, 128):
        if cand > max_tile_n or n % cand != 0:
            continue
        need = batch * cand * (8 * 2 * 4 + 6 * 4)
        if need <= _VMEM_BUDGET_BYTES:
            return cand
    return None


def _pinn_loss_tiled(args, dt: float, batch: int, n: int, tile_n: int):
    num_tiles = n // tile_n
    # Leading "parallel" axis: on v7x megacore each TensorCore streams half the
    # tiles and emits its own partial sums; on v5e/v6e it simply runs serially.
    num_cores = 2 if (num_tiles % 2 == 0 and num_tiles >= 4) else 1
    tiles_per_core = num_tiles // num_cores

    kernel = functools.partial(
        _pinn_tiled_kernel, inv_dt=1.0 / dt, tiles_per_core=tiles_per_core
    )

    # TODO(synk): on v5e, pipeline_mode=pl.Buffered(3) on the input specs can hide
    # the longer per-tile DMA latency if profiling still shows bubbles.
    in_spec = pl.BlockSpec(
        (batch, tile_n), lambda c, t: (0, c * tiles_per_core + t)
    )
    out_spec = pl.BlockSpec((1, batch, 8), lambda c, t: (c, 0, 0))

    bytes_accessed = (
        sum(int(a.size) * a.dtype.itemsize for a in args) + num_cores * batch * 8 * 4
    )
    cost = pl.CostEstimate(
        flops=int(30 * batch * n),
        transcendentals=int(batch * n),
        bytes_accessed=int(bytes_accessed),
    )

    parts = pl.pallas_call(
        kernel,
        out_shape=jax.ShapeDtypeStruct((num_cores, batch, 8), jnp.float32),
        grid=(num_cores, tiles_per_core),
        in_specs=[in_spec] * 8,
        out_specs=out_spec,
        scratch_shapes=[pltpu.VMEM((batch, tile_n), jnp.float32)] * 6,
        compiler_params=pltpu.CompilerParams(
            dimension_semantics=("parallel", "arbitrary"),
            vmem_limit_bytes=_VMEM_LIMIT_BYTES,
        ),
        cost_estimate=cost,
    )(*args)

    # Tiny epilogue in JAX: combine per-core partials and finish the means.
    p = jnp.sum(parts, axis=0)  # (B, 8)
    denom = float(batch * n)
    data_loss = jnp.sum(p[:, 0]) / denom
    wave_loss = jnp.sum(p[:, 1]) / denom
    disp_loss = jnp.sum(p[:, 2]) / denom
    boundary_loss = jnp.sum(p[:, 3]) / denom

    s1 = p[:, 4]
    s2 = p[:, 5]
    # unbiased per-row variance from streaming sums: (S2 - S1^2/N) / (N - 1)
    flux_var = (s2 - s1 * s1 / float(n)) / float(n - 1)
    energy_loss = jnp.mean(flux_var)

    total = (
        DATA_LOSS_W * data_loss
        + PHYSICS_LOSS_W * wave_loss
        + CONSERVATION_LOSS_W * energy_loss
        + PHYSICS_LOSS_W * disp_loss
        + BOUNDARY_LOSS_W * boundary_loss
    )
    return {
        "data_loss": data_loss,
        "wave_equation_loss": wave_loss,
        "energy_conservation_loss": energy_loss,
        "dispersion_relation_loss": disp_loss,
        "boundary_condition_loss": boundary_loss,
        "total_loss": total,
    }


# --------------------------------------------------------------------------
# Public wrapper (PINNLoss.forward with all physics terms enabled,
# 'coordinates' present, prev_predictions provided).
# --------------------------------------------------------------------------
def pinn_loss(
    pred_values, targets,
    wave_height, prev_wave_height,
    group_velocity, wave_energy,
    wave_period, wavenumber,
    dt: float = 3600.0,
    *,
    min_tiled_elements: int = 64 * 1024,
    max_tile_n: int = 4096,
):
    args = tuple(
        jnp.asarray(a)
        for a in (
            pred_values, targets,
            wave_height, prev_wave_height,
            group_velocity, wave_energy,
            wave_period, wavenumber,
        )
    )
    batch, n = args[2].shape

    tile_n = _select_tile_n(batch, n, max_tile_n)
    if batch * n < min_tiled_elements or tile_n is None:
        # TODO(synk): the single-block fallback requires all 8 full arrays to fit
        # in VMEM; a pad-and-mask tiled path for huge N not divisible by 128 is
        # not implemented.
        return _pinn_loss_single_block(args, dt, batch, n)
    return _pinn_loss_tiled(args, dt, batch, n, tile_n)


# --------------------------------------------------------------------------
# Demo / self-check
# --------------------------------------------------------------------------
def _make_inputs(key, batch, n, h_range, t_range):
    ks = jax.random.split(key, 6)
    targets = jax.random.normal(ks[0], (batch, n), dtype=jnp.float32)
    pred = targets + 0.1 * jax.random.normal(ks[1], (batch, n), dtype=jnp.float32)
    h = jax.random.uniform(ks[2], (batch, n), minval=h_range[0], maxval=h_range[1],
                           dtype=jnp.float32)
    hp = h + 0.05 * jax.random.normal(ks[3], (batch, n), dtype=jnp.float32)
    per = jax.random.uniform(ks[4], (batch, n), minval=t_range[0], maxval=t_range[1],
                             dtype=jnp.float32)
    # PhysicsCalculator-style auxiliary predictions (perturbed so residuals != 0)
    cg = (GRAVITY / (4.0 * math.pi)) * per
    e = (1.0 / 8.0) * WATER_DENSITY * GRAVITY * h * h
    k = (2.0 * math.pi / (per + 1e-6)) ** 2 / GRAVITY
    k = k * (1.0 + 0.01 * jax.random.normal(ks[5], (batch, n), dtype=jnp.float32))
    return pred, targets, h, hp, cg, e, per, k


def _ref_losses_np(pred, tgt, h, hp, cg, e, per, k, dt):
    """NumPy float64 reference faithful to the PyTorch module."""
    to = lambda x: np.asarray(x, dtype=np.float64)
    pred, tgt, h, hp, cg, e, per, k = map(to, (pred, tgt, h, hp, cg, e, per, k))
    data = np.mean((pred - tgt) ** 2)
    dh_dt = (h - hp) / dt
    wave = np.mean(dh_dt ** 2)  # spatial gradients are zeros in the reference
    flux = e * cg
    energy = np.var(flux, axis=1, ddof=1).mean()
    omega = 2.0 * np.pi / (per + 1e-6)
    disp = np.mean((omega ** 2 - GRAVITY * k) ** 2)
    bnd = (np.maximum(-h, 0.0).mean() + np.maximum(h - 20.0, 0.0).mean()
           + np.maximum(1.0 - per, 0.0).mean() + np.maximum(per - 25.0, 0.0).mean())
    total = (DATA_LOSS_W * data + PHYSICS_LOSS_W * wave + CONSERVATION_LOSS_W * energy
             + PHYSICS_LOSS_W * disp + BOUNDARY_LOSS_W * bnd)
    return {
        "data_loss": data,
        "wave_equation_loss": wave,
        "energy_conservation_loss": energy,
        "dispersion_relation_loss": disp,
        "boundary_condition_loss": bnd,
        "total_loss": total,
    }


if __name__ == "__main__":
    key = jax.random.PRNGKey(0)

    # Case 1: small shape -> single-block fast path.
    a1 = _make_inputs(jax.random.fold_in(key, 1), 8, 128, (0.5, 6.0), (5.0, 15.0))
    out1 = jax.block_until_ready(pinn_loss(*a1, dt=3600.0))
    ref1 = _ref_losses_np(*a1, dt=3600.0)
    for name in _LOSS_NAMES:
        np.testing.assert_allclose(float(out1[name]), ref1[name], rtol=2e-3, atol=1e-6)

    # Case 2: forced tiled + parallel-core path (still small: 8 x 2048, tile 256).
    a2 = _make_inputs(jax.random.fold_in(key, 2), 8, 2048, (-1.0, 22.0), (0.5, 26.0))
    out2 = jax.block_until_ready(
        pinn_loss(*a2, dt=3600.0, min_tiled_elements=0, max_tile_n=256)
    )
    ref2 = _ref_losses_np(*a2, dt=3600.0)
    for name in _LOSS_NAMES:
        np.testing.assert_allclose(float(out2[name]), ref2[name], rtol=2e-3, atol=1e-6)

    print("KERNEL_OK")
</pallas_src>

<mosaic_0001>
module attributes {stable_mosaic.version = 11 : i64} {
  func.func @_pinn_small_kernel(%arg0: memref<8x128xf32, #tpu.memory_space<vmem>>, %arg1: memref<8x128xf32, #tpu.memory_space<vmem>>, %arg2: memref<8x128xf32, #tpu.memory_space<vmem>>, %arg3: memref<8x128xf32, #tpu.memory_space<vmem>>, %arg4: memref<8x128xf32, #tpu.memory_space<vmem>>, %arg5: memref<8x128xf32, #tpu.memory_space<vmem>>, %arg6: memref<8x128xf32, #tpu.memory_space<vmem>>, %arg7: memref<8x128xf32, #tpu.memory_space<vmem>>, %arg8: memref<1x8xf32, #tpu.memory_space<smem>>) attributes {dimension_semantics = [], scalar_prefetch = 0 : i64, scratch_operands = 0 : i64, tpu.core_type = #tpu.core_type<tc>} {
    %c0 = arith.constant 0 : index
    %c0_0 = arith.constant 0 : index
    %0 = vector.load %arg0[%c0, %c0_0] : memref<8x128xf32, #tpu.memory_space<vmem>>, vector<8x128xf32>
    %c0_1 = arith.constant 0 : index
    %c0_2 = arith.constant 0 : index
    %1 = vector.load %arg1[%c0_1, %c0_2] : memref<8x128xf32, #tpu.memory_space<vmem>>, vector<8x128xf32>
    %c0_3 = arith.constant 0 : index
    %c0_4 = arith.constant 0 : index
    %2 = vector.load %arg2[%c0_3, %c0_4] : memref<8x128xf32, #tpu.memory_space<vmem>>, vector<8x128xf32>
    %c0_5 = arith.constant 0 : index
    %c0_6 = arith.constant 0 : index
    %3 = vector.load %arg3[%c0_5, %c0_6] : memref<8x128xf32, #tpu.memory_space<vmem>>, vector<8x128xf32>
    %c0_7 = arith.constant 0 : index
    %c0_8 = arith.constant 0 : index
    %4 = vector.load %arg4[%c0_7, %c0_8] : memref<8x128xf32, #tpu.memory_space<vmem>>, vector<8x128xf32>
    %c0_9 = arith.constant 0 : index
    %c0_10 = arith.constant 0 : index
    %5 = vector.load %arg5[%c0_9, %c0_10] : memref<8x128xf32, #tpu.memory_space<vmem>>, vector<8x128xf32>
    %c0_11 = arith.constant 0 : index
    %c0_12 = arith.constant 0 : index
    %6 = vector.load %arg6[%c0_11, %c0_12] : memref<8x128xf32, #tpu.memory_space<vmem>>, vector<8x128xf32>
    %c0_13 = arith.constant 0 : index
    %c0_14 = arith.constant 0 : index
    %7 = vector.load %arg7[%c0_13, %c0_14] : memref<8x128xf32, #tpu.memory_space<vmem>>, vector<8x128xf32>
    %8 = arith.subf %0, %1 : vector<8x128xf32>
    %9 = arith.mulf %8, %8 : vector<8x128xf32>
    %10 = vector.shape_cast %9 : vector<8x128xf32> to vector<1x8x128xf32>
    %cst = arith.constant dense<0.000000e+00> : vector<1xf32>
    %11 = vector.multi_reduction <add>, %10, %cst [1, 2] : vector<1x8x128xf32> to vector<1xf32>
    %12 = vector.shape_cast %11 : vector<1xf32> to vector<1x1x1xf32>
    %13 = vector.extract %12[0, 0, 0] : f32 from vector<1x1x1xf32>
    %cst_15 = arith.constant 1.024000e+03 : f32
    %14 = arith.divf %13, %cst_15 : f32
    %15 = arith.subf %2, %3 : vector<8x128xf32>
    %cst_16 = arith.constant 2.77777785E-4 : f32
    %16 = vector.broadcast %cst_16 : f32 to vector<8x128xf32>
    %17 = arith.mulf %15, %16 : vector<8x128xf32>
    %18 = arith.mulf %17, %17 : vector<8x128xf32>
    %19 = vector.shape_cast %18 : vector<8x128xf32> to vector<1x8x128xf32>
    %cst_17 = arith.constant dense<0.000000e+00> : vector<1xf32>
    %20 = vector.multi_reduction <add>, %19, %cst_17 [1, 2] : vector<1x8x128xf32> to vector<1xf32>
    %21 = vector.shape_cast %20 : vector<1xf32> to vector<1x1x1xf32>
    %22 = vector.extract %21[0, 0, 0] : f32 from vector<1x1x1xf32>
    %cst_18 = arith.constant 1.024000e+03 : f32
    %23 = arith.divf %22, %cst_18 : f32
    %24 = arith.mulf %5, %4 : vector<8x128xf32>
    %cst_19 = arith.constant dense<0.000000e+00> : vector<8xf32>
    %25 = vector.multi_reduction <add>, %24, %cst_19 [1] : vector<8x128xf32> to vector<8xf32>
    %26 = vector.shape_cast %25 : vector<8xf32> to vector<8x1xf32>
    %cst_20 = arith.constant 1.280000e+02 : f32
    %27 = vector.broadcast %cst_20 : f32 to vector<8x1xf32>
    %28 = arith.divf %26, %27 : vector<8x1xf32>
    %29 = vector.broadcast %28 : vector<8x1xf32> to vector<8x128xf32>
    %30 = arith.subf %24, %29 : vector<8x128xf32>
    %31 = arith.mulf %30, %30 : vector<8x128xf32>
    %cst_21 = arith.constant dense<0.000000e+00> : vector<8xf32>
    %32 = vector.multi_reduction <add>, %31, %cst_21 [1] : vector<8x128xf32> to vector<8xf32>
    %33 = vector.shape_cast %32 : vector<8xf32> to vector<8x1xf32>
    %cst_22 = arith.constant 0.00787401571 : f32
    %34 = vector.broadcast %cst_22 : f32 to vector<8x1xf32>
    %35 = arith.mulf %33, %34 : vector<8x1xf32>
    %36 = vector.shape_cast %35 : vector<8x1xf32> to vector<1x8x1xf32>
    %cst_23 = arith.constant dense<0.000000e+00> : vector<1xf32>
    %37 = vector.multi_reduction <add>, %36, %cst_23 [1, 2] : vector<1x8x1xf32> to vector<1xf32>
    %38 = vector.shape_cast %37 : vector<1xf32> to vector<1x1x1xf32>
    %39 = vector.extract %38[0, 0, 0] : f32 from vector<1x1x1xf32>
    %cst_24 = arith.constant 8.000000e+00 : f32
    %40 = arith.divf %39, %cst_24 : f32
    %cst_25 = arith.constant 9.99999997E-7 : f32
    %41 = vector.broadcast %cst_25 : f32 to vector<8x128xf32>
    %42 = arith.addf %6, %41 : vector<8x128xf32>
    %43 = tpu.reciprocal %42 : vector<8x128xf32> -> vector<8x128xf32>
    %cst_26 = arith.constant 6.28318548 : f32
    %44 = vector.broadcast %cst_26 : f32 to vector<8x128xf32>
    %45 = arith.mulf %44, %43 : vector<8x128xf32>
    %46 = arith.mulf %45, %45 : vector<8x128xf32>
    %cst_27 = arith.constant 9.810000e+00 : f32
    %47 = vector.broadcast %cst_27 : f32 to vector<8x128xf32>
    %48 = arith.mulf %47, %7 : vector<8x128xf32>
    %49 = arith.subf %46, %48 : vector<8x128xf32>
    %50 = arith.mulf %49, %49 : vector<8x128xf32>
    %51 = vector.shape_cast %50 : vector<8x128xf32> to vector<1x8x128xf32>
    %cst_28 = arith.constant dense<0.000000e+00> : vector<1xf32>
    %52 = vector.multi_reduction <add>, %51, %cst_28 [1, 2] : vector<1x8x128xf32> to vector<1xf32>
    %53 = vector.shape_cast %52 : vector<1xf32> to vector<1x1x1xf32>
    %54 = vector.extract %53[0, 0, 0] : f32 from vector<1x1x1xf32>
    %cst_29 = arith.constant 1.024000e+03 : f32
    %55 = arith.divf %54, %cst_29 : f32
    %cst_30 = arith.constant 0.000000e+00 : f32
    %56 = vector.broadcast %cst_30 : f32 to vector<8x128xf32>
    %cst_31 = arith.constant 0.000000e+00 : f32
    %57 = vector.broadcast %cst_31 : f32 to vector<8x128xf32>
    %58 = arith.subf %57, %2 : vector<8x128xf32>
    %59 = arith.maximumf %58, %56 : vector<8x128xf32>
    %cst_32 = arith.constant 2.000000e+01 : f32
    %60 = vector.broadcast %cst_32 : f32 to vector<8x128xf32>
    %61 = arith.subf %2, %60 : vector<8x128xf32>
    %62 = arith.maximumf %61, %56 : vector<8x128xf32>
    %63 = arith.addf %59, %62 : vector<8x128xf32>
    %cst_33 = arith.constant 1.000000e+00 : f32
    %64 = vector.broadcast %cst_33 : f32 to vector<8x128xf32>
    %65 = arith.subf %64, %6 : vector<8x128xf32>
    %66 = arith.maximumf %65, %56 : vector<8x128xf32>
    %67 = arith.addf %63, %66 : vector<8x128xf32>
    %cst_34 = arith.constant 2.500000e+01 : f32
    %68 = vector.broadcast %cst_34 : f32 to vector<8x128xf32>
    %69 = arith.subf %6, %68 : vector<8x128xf32>
    %70 = arith.maximumf %69, %56 : vector<8x128xf32>
    %71 = arith.addf %67, %70 : vector<8x128xf32>
    %72 = vector.shape_cast %71 : vector<8x128xf32> to vector<1x8x128xf32>
    %cst_35 = arith.constant dense<0.000000e+00> : vector<1xf32>
    %73 = vector.multi_reduction <add>, %72, %cst_35 [1, 2] : vector<1x8x128xf32> to vector<1xf32>
    %74 = vector.shape_cast %73 : vector<1xf32> to vector<1x1x1xf32>
    %75 = vector.extract %74[0, 0, 0] : f32 from vector<1x1x1xf32>
    %cst_36 = arith.constant 1.024000e+03 : f32
    %76 = arith.divf %75, %cst_36 : f32
    %cst_37 = arith.constant 1.000000e+00 : f32
    %77 = arith.mulf %cst_37, %14 : f32
    %cst_38 = arith.constant 5.000000e-01 : f32
    %78 = arith.mulf %cst_38, %23 : f32
    %79 = arith.addf %77, %78 : f32
    %cst_39 = arith.constant 2.000000e-01 : f32
    %80 = arith.mulf %cst_39, %40 : f32
    %81 = arith.addf %79, %80 : f32
    %cst_40 = arith.constant 5.000000e-01 : f32
    %82 = arith.mulf %cst_40, %55 : f32
    %83 = arith.addf %81, %82 : f32
    %cst_41 = arith.constant 3.000000e-01 : f32
    %84 = arith.mulf %cst_41, %76 : f32
    %85 = arith.addf %83, %84 : f32
    %c0_42 = arith.constant 0 : index
    %c0_43 = arith.constant 0 : index
    %86 = memref.load %arg8[%c0_42, %c0_43] : memref<1x8xf32, #tpu.memory_space<smem>>
    memref.store %14, %arg8[%c0_42, %c0_43] : memref<1x8xf32, #tpu.memory_space<smem>>
    %c0_44 = arith.constant 0 : index
    %c1 = arith.constant 1 : index
    %87 = memref.load %arg8[%c0_44, %c1] : memref<1x8xf32, #tpu.memory_space<smem>>
    memref.store %23, %arg8[%c0_44, %c1] : memref<1x8xf32, #tpu.memory_space<smem>>
    %c0_45 = arith.constant 0 : index
    %c2 = arith.constant 2 : index
    %88 = memref.load %arg8[%c0_45, %c2] : memref<1x8xf32, #tpu.memory_space<smem>>
    memref.store %40, %arg8[%c0_45, %c2] : memref<1x8xf32, #tpu.memory_space<smem>>
    %c0_46 = arith.constant 0 : index
    %c3 = arith.constant 3 : index
    %89 = memref.load %arg8[%c0_46, %c3] : memref<1x8xf32, #tpu.memory_space<smem>>
    memref.store %55, %arg8[%c0_46, %c3] : memref<1x8xf32, #tpu.memory_space<smem>>
    %c0_47 = arith.constant 0 : index
    %c4 = arith.constant 4 : index
    %90 = memref.load %arg8[%c0_47, %c4] : memref<1x8xf32, #tpu.memory_space<smem>>
    memref.store %76, %arg8[%c0_47, %c4] : memref<1x8xf32, #tpu.memory_space<smem>>
    %c0_48 = arith.constant 0 : index
    %c5 = arith.constant 5 : index
    %91 = memref.load %arg8[%c0_48, %c5] : memref<1x8xf32, #tpu.memory_space<smem>>
    memref.store %85, %arg8[%c0_48, %c5] : memref<1x8xf32, #tpu.memory_space<smem>>
    %cst_49 = arith.constant 0.000000e+00 : f32
    %c0_50 = arith.constant 0 : index
    %c6 = arith.constant 6 : index
    %92 = memref.load %arg8[%c0_50, %c6] : memref<1x8xf32, #tpu.memory_space<smem>>
    memref.store %cst_49, %arg8[%c0_50, %c6] : memref<1x8xf32, #tpu.memory_space<smem>>
    %cst_51 = arith.constant 0.000000e+00 : f32
    %c0_52 = arith.constant 0 : index
    %c7 = arith.constant 7 : index
    %93 = memref.load %arg8[%c0_52, %c7] : memref<1x8xf32, #tpu.memory_space<smem>>
    memref.store %cst_51, %arg8[%c0_52, %c7] : memref<1x8xf32, #tpu.memory_space<smem>>
    return
  }
}

</mosaic_0001>

<llo_original>
// kernel: tpu_custom_call.1
$region0: #{tpu_custom_call.1}
  #allocation0 [shape = 'u32[]', space=smem, size = 0x4, offset = 0x4, fixed_abs, tag = 'smem constant byte address 0x4 - core index']
  #allocation1 [shape = 'u32[144,128]{1,0:T(1,128)}', space=vmem, size = 0x12000, scoped, tag = 'internal scratch']
  %s0 = inlined_call_operand.hbm [shape: f32[8,128], index: 0, kind: input, shape index: {}]
  %s1 = inlined_call_operand.hbm [shape: f32[8,128], index: 1, kind: input, shape index: {}]
  %s2 = inlined_call_operand.hbm [shape: f32[8,128], index: 2, kind: input, shape index: {}]
  %s3 = inlined_call_operand.hbm [shape: f32[8,128], index: 3, kind: input, shape index: {}]
  %s4 = inlined_call_operand.hbm [shape: f32[8,128], index: 4, kind: input, shape index: {}]
  %s5 = inlined_call_operand.vmem [shape: f32[8,128], index: 5, kind: input, shape index: {}]
  %s6 = inlined_call_operand.hbm [shape: f32[8,128], index: 6, kind: input, shape index: {}]
  %s7 = inlined_call_operand.hbm [shape: f32[8,128], index: 7, kind: input, shape index: {}]
  %s8 = inlined_call_operand.hbm [shape: f32[1,8], index: 8, kind: output, shape index: {}]
  %s9 = sld [smem:[#allocation0]]
  $region70: #{tpu_custom_call.1} parent=0
    _
  %s11 = ssub.s32 1, %s9
  %s12 = scalar_select 0, %s11, %s9
  $region1: #{tpu_custom_call.1} parent=0
    #allocation2 [shape = 'u8[4096]{0}', space=vmem, size = 0x1000, scoped, tag = 'input window, operand 0, single buffered']
    #allocation3 [shape = 's32[1]{0}', space=sflag, size = 0x4, scoped, tag = 'scoped memory for tpu_custom_call.1']
    #allocation4 [shape = 's32[1]{0}', space=sflag, size = 0x4, scoped, tag = 'scoped memory for tpu_custom_call.1']
    #allocation5 [shape = 'u8[4096]{0}', space=vmem, size = 0x1000, scoped, tag = 'input window, operand 1, single buffered']
    #allocation6 [shape = 's32[1]{0}', space=sflag, size = 0x4, scoped, tag = 'scoped memory for tpu_custom_call.1']
    #allocation7 [shape = 'u8[4096]{0}', space=vmem, size = 0x1000, scoped, tag = 'input window, operand 2, single buffered']
    #allocation8 [shape = 'u8[4096]{0}', space=vmem, size = 0x1000, scoped, tag = 'input window, operand 3, single buffered']
    #allocation9 [shape = 's32[1]{0}', space=sflag, size = 0x4, scoped, tag = 'scoped memory for tpu_custom_call.1']
    #allocation10 [shape = 'u8[4096]{0}', space=vmem, size = 0x1000, scoped, tag = 'input window, operand 4, single buffered']
    #allocation11 [shape = 'u8[4096]{0}', space=vmem, size = 0x1000, scoped, tag = 'input window, operand 6, single buffered']
    #allocation12 [shape = 's32[1]{0}', space=sflag, size = 0x4, scoped, tag = 'scoped memory for tpu_custom_call.1']
    #allocation13 [shape = 'u8[4096]{0}', space=vmem, size = 0x1000, scoped, tag = 'input window, operand 7, single buffered']
    #allocation14 [shape = 'u8[512]{0}', space=smem, size = 0x200, scoped, tag = 'output window, operand 0, single buffered']
    %13 = vsyncpa [#allocation3], 0
    %14 = vsyncpa [#allocation6], 0
    %15 = vsyncpa [#allocation9], 0
    %16 = vsyncpa [#allocation12], 0
    %17 = vsyncpa [#allocation4], 0
    // Predicated region
    $region2: #{tpu_custom_call.1} parent=1 // pred_check
      _
    $region3: #{tpu_custom_call.1} parent=1 // pred_check_branch
      %19 = sbr.rel (0) target = $region5
    $region4: #{tpu_custom_call.1} parent=1 // pred_region
      %s21 = ssub.s32 128, 128
      %22 = vsyncadd [#allocation3], %s21
      %s24 = sshll.u32 [#allocation2], 4
      %s25 = int_to_ptr.vmem [resolvable:$true] %s24
      %27 = dma.hbm_to_vmem [thread:$0]  %s0, 128, %s25, [#allocation3]
    $region5: #{tpu_custom_call.1} parent=1 // pred_fallthru
      _
    // Predicated region
    $region6: #{tpu_custom_call.1} parent=1 // pred_check
      _
    $region7: #{tpu_custom_call.1} parent=1 // pred_check_branch
      %29 = sbr.rel (0) target = $region9
    $region8: #{tpu_custom_call.1} parent=1 // pred_region
      %s31 = ssub.s32 128, 128
      %32 = vsyncadd [#allocation6], %s31
      %s34 = sshll.u32 [#allocation5], 4
      %s35 = int_to_ptr.vmem [resolvable:$true] %s34
      %37 = dma.hbm_to_vmem [thread:$0]  %s1, 128, %s35, [#allocation6]
    $region9: #{tpu_custom_call.1} parent=1 // pred_fallthru
      _
    // Predicated region
    $region10: #{tpu_custom_call.1} parent=1 // pred_check
      _
    $region11: #{tpu_custom_call.1} parent=1 // pred_check_branch
      %39 = sbr.rel (0) target = $region13
    $region12: #{tpu_custom_call.1} parent=1 // pred_region
      %s41 = ssub.s32 128, 128
      %42 = vsyncadd [#allocation6], %s41
      %s44 = sshll.u32 [#allocation7], 4
      %s45 = int_to_ptr.vmem [resolvable:$true] %s44
      %47 = dma.hbm_to_vmem [thread:$0]  %s2, 128, %s45, [#allocation6]
    $region13: #{tpu_custom_call.1} parent=1 // pred_fallthru
      _
    // Predicated region
    $region14: #{tpu_custom_call.1} parent=1 // pred_check
      _
    $region15: #{tpu_custom_call.1} parent=1 // pred_check_branch
      %49 = sbr.rel (0) target = $region17
    $region16: #{tpu_custom_call.1} parent=1 // pred_region
      %s51 = ssub.s32 128, 128
      %52 = vsyncadd [#allocation9], %s51
      %s54 = sshll.u32 [#allocation8], 4
      %s55 = int_to_ptr.vmem [resolvable:$true] %s54
      %57 = dma.hbm_to_vmem [thread:$0]  %s3, 128, %s55, [#allocation9]
    $region17: #{tpu_custom_call.1} parent=1 // pred_fallthru
      _
    // Predicated region
    $region18: #{tpu_custom_call.1} parent=1 // pred_check
      _
    $region19: #{tpu_custom_call.1} parent=1 // pred_check_branch
      %59 = sbr.rel (0) target = $region21
    $region20: #{tpu_custom_call.1} parent=1 // pred_region
      %s61 = ssub.s32 128, 128
      %62 = vsyncadd [#allocation9], %s61
      %s64 = sshll.u32 [#allocation10], 4
      %s65 = int_to_ptr.vmem [resolvable:$true] %s64
      %67 = dma.hbm_to_vmem [thread:$0]  %s4, 128, %s65, [#allocation9]
    $region21: #{tpu_custom_call.1} parent=1 // pred_fallthru
      _
    // Predicated region
    $region22: #{tpu_custom_call.1} parent=1 // pred_check
      _
    $region23: #{tpu_custom_call.1} parent=1 // pred_check_branch
      %69 = sbr.rel (0) target = $region25
    $region24: #{tpu_custom_call.1} parent=1 // pred_region
      _
    $region25: #{tpu_custom_call.1} parent=1 // pred_fallthru
      _
    // Predicated region
    $region26: #{tpu_custom_call.1} parent=1 // pred_check
      _
    $region27: #{tpu_custom_call.1} parent=1 // pred_check_branch
      %71 = sbr.rel (0) target = $region29
    $region28: #{tpu_custom_call.1} parent=1 // pred_region
      %s73 = ssub.s32 128, 128
      %74 = vsyncadd [#allocation12], %s73
      %s76 = sshll.u32 [#allocation11], 4
      %s77 = int_to_ptr.vmem [resolvable:$true] %s76
      %79 = dma.hbm_to_vmem [thread:$0]  %s6, 128, %s77, [#allocation12]
    $region29: #{tpu_custom_call.1} parent=1 // pred_fallthru
      _
    // Predicated region
    $region30: #{tpu_custom_call.1} parent=1 // pred_check
      _
    $region31: #{tpu_custom_call.1} parent=1 // pred_check_branch
      %81 = sbr.rel (0) target = $region33
    $region32: #{tpu_custom_call.1} parent=1 // pred_region
      %s83 = ssub.s32 128, 128
      %84 = vsyncadd [#allocation12], %s83
      %s86 = sshll.u32 [#allocation13], 4
      %s87 = int_to_ptr.vmem [resolvable:$true] %s86
      %89 = dma.hbm_to_vmem [thread:$0]  %s7, 128, %s87, [#allocation12]
    $region33: #{tpu_custom_call.1} parent=1 // pred_fallthru
      _
    // Predicated region
    $region34: #{tpu_custom_call.1} parent=1 // pred_check
      _
    $region35: #{tpu_custom_call.1} parent=1 // pred_check_branch
      %91 = sbr.rel (0) target = $region37
    $region36: #{tpu_custom_call.1} parent=1 // pred_region
      %92 = dma.done [#allocation3], 128
    $region37: #{tpu_custom_call.1} parent=1 // pred_fallthru
      _
    // Predicated region
    $region38: #{tpu_custom_call.1} parent=1 // pred_check
      _
    $region39: #{tpu_custom_call.1} parent=1 // pred_check_branch
      %94 = sbr.rel (0) target = $region41
    $region40: #{tpu_custom_call.1} parent=1 // pred_region
      %95 = dma.done [#allocation6], 128
    $region41: #{tpu_custom_call.1} parent=1 // pred_fallthru
      _
    // Predicated region
    $region42: #{tpu_custom_call.1} parent=1 // pred_check
      _
    $region43: #{tpu_custom_call.1} parent=1 // pred_check_branch
      %97 = sbr.rel (0) target = $region45
    $region44: #{tpu_custom_call.1} parent=1 // pred_region
      %98 = dma.done [#allocation6], 128
    $region45: #{tpu_custom_call.1} parent=1 // pred_fallthru
      _
    // Predicated region
    $region46: #{tpu_custom_call.1} parent=1 // pred_check
      _
    $region47: #{tpu_custom_call.1} parent=1 // pred_check_branch
      %100 = sbr.rel (0) target = $region49
    $region48: #{tpu_custom_call.1} parent=1 // pred_region
      %101 = dma.done [#allocation9], 128
    $region49: #{tpu_custom_call.1} parent=1 // pred_fallthru
      _
    // Predicated region
    $region50: #{tpu_custom_call.1} parent=1 // pred_check
      _
    $region51: #{tpu_custom_call.1} parent=1 // pred_check_branch
      %103 = sbr.rel (0) target = $region53
    $region52: #{tpu_custom_call.1} parent=1 // pred_region
      %104 = dma.done [#allocation9], 128
    $region53: #{tpu_custom_call.1} parent=1 // pred_fallthru
      _
    // Predicated region
    $region54: #{tpu_custom_call.1} parent=1 // pred_check
      _
    $region55: #{tpu_custom_call.1} parent=1 // pred_check_branch
      %106 = sbr.rel (0) target = $region57
    $region56: #{tpu_custom_call.1} parent=1 // pred_region
      %107 = dma.done [#allocation12], 128
    $region57: #{tpu_custom_call.1} parent=1 // pred_fallthru
      _
    // Predicated region
    $region58: #{tpu_custom_call.1} parent=1 // pred_check
      _
    $region59: #{tpu_custom_call.1} parent=1 // pred_check_branch
      %109 = sbr.rel (0) target = $region61
    $region60: #{tpu_custom_call.1} parent=1 // pred_region
      %110 = dma.done [#allocation12], 128
    $region61: #{tpu_custom_call.1} parent=1 // pred_fallthru
      _
    %v111 = vld [vmem:[#allocation2] sm:$0xff]
    %v112 = vld [vmem:[#allocation5] sm:$0xff]
    %v113 = vld [vmem:[#allocation7] sm:$0xff]
    %v114 = vld [vmem:[#allocation8] sm:$0xff]
    %v115 = vld [vmem:[#allocation10] sm:$0xff]
    %v116 = vld [vmem:[%s5] sm:$0xff]
    %v117 = vld [vmem:[#allocation11] sm:$0xff]
    %v118 = vld [vmem:[#allocation13] sm:$0xff]
    %v119 = vsub.f32 %v111, %v112
    %v120 = vmul.f32 %v119, %v119
    %121 = vadd.xlane.f32.xlu0 %v120
    %v122 = vpop.xlane.xlu0 %121
    %v123 = vrot.slane %v122, 4
    %v124 = vadd.f32 %v122, %v123
    %v125 = vrot.slane %v124, 2
    %v126 = vadd.f32 %v124, %v125
    %v127 = vrot.slane %v126, 1
    %v128 = vadd.f32 %v126, %v127
    %s129 = vtos %v128
    %v130 = vrcp.pop 1024.0
    %s131 = vtos %v130
    %s132 = smul.f32 %s129, %s131
    %v133 = vsub.f32 %v113, %v114
    %v134 = vmul.f32 %v133, 0.00027777778
    %v135 = vmul.f32 %v134, %v134
    %136 = vadd.xlane.f32.xlu0 %v135
    %v137 = vpop.xlane.xlu0 %136
    %v138 = vrot.slane %v137, 4
    %v139 = vadd.f32 %v137, %v138
    %v140 = vrot.slane %v139, 2
    %v141 = vadd.f32 %v139, %v140
    %v142 = vrot.slane %v141, 1
    %v143 = vadd.f32 %v141, %v142
    %s144 = vtos %v143
    %v145 = vrcp.pop 1024.0
    %s146 = vtos %v145
    %s147 = smul.f32 %s144, %s146
    %v148 = vmul.f32 %v116, %v115
    %149 = vadd.xlane.f32.xlu0 %v148
    %v150 = vpop.xlane.xlu0 %149
    %v151 = vrcp.pop 128.0
    %v152 = vmul.f32 %v150, %v151
    %v153 = vsub.f32 %v148, %v152
    %v154 = vmul.f32 %v153, %v153
    %155 = vadd.xlane.f32.xlu0 %v154
    %v156 = vpop.xlane.xlu0 %155
    %v157 = vmul.f32 %v156, 0.007874016
    %vm158 = vcmask 7168
    %v159 = vsel %vm158, %v157, 0.0
    %160 = vadd.xlane.f32.xlu0 %v159
    %v161 = vpop.xlane.xlu0 %160
    %v162 = vrot.slane %v161, 4
    %v163 = vadd.f32 %v161, %v162
    %v164 = vrot.slane %v163, 2
    %v165 = vadd.f32 %v163, %v164
    %v166 = vrot.slane %v165, 1
    %v167 = vadd.f32 %v165, %v166
    %s168 = vtos %v167
    %v169 = vrcp.pop 8.0
    %s170 = vtos %v169
    %s171 = smul.f32 %s168, %s170
    %v172 = vadd.f32 %v117, 1e-06
    %v173 = vrcp.pop %v172
    %v174 = vmul.f32 %v173, 6.2831855
    %v175 = vmul.f32 %v174, %v174
    %v176 = vmul.f32 %v118, 9.81
    %v177 = vsub.f32 %v175, %v176
    %v178 = vmul.f32 %v177, %v177
    %179 = vadd.xlane.f32.xlu0 %v178
    %v180 = vpop.xlane.xlu0 %179
    %v181 = vrot.slane %v180, 4
    %v182 = vadd.f32 %v180, %v181
    %v183 = vrot.slane %v182, 2
    %v184 = vadd.f32 %v182, %v183
    %v185 = vrot.slane %v184, 1
    %v186 = vadd.f32 %v184, %v185
    %s187 = vtos %v186
    %v188 = vrcp.pop 1024.0
    %s189 = vtos %v188
    %s190 = smul.f32 %s187, %s189
    %v191 = vsub.f32 0.0, %v113
    %v192 = vmax.f32 %v191, 0.0
    %v193 = vsub.f32 %v113, 20.0
    %v194 = vmax.f32 %v193, 0.0
    %v195 = vadd.f32 %v192, %v194
    %v196 = vsub.f32 1.0, %v117
    %v197 = vmax.f32 %v196, 0.0
    %v198 = vadd.f32 %v195, %v197
    %v199 = vsub.f32 %v117, 25.0
    %v200 = vmax.f32 %v199, 0.0
    %v201 = vadd.f32 %v198, %v200
    %202 = vadd.xlane.f32.xlu0 %v201
    %v203 = vpop.xlane.xlu0 %202
    %v204 = vrot.slane %v203, 4
    %v205 = vadd.f32 %v203, %v204
    %v206 = vrot.slane %v205, 2
    %v207 = vadd.f32 %v205, %v206
    %v208 = vrot.slane %v207, 1
    %v209 = vadd.f32 %v207, %v208
    %s210 = vtos %v209
    %v211 = vrcp.pop 1024.0
    %s212 = vtos %v211
    %s213 = smul.f32 %s210, %s212
    %s214 = smul.f32 %s147, 0.5
    %s215 = sadd.f32 %s132, %s214
    %s216 = smul.f32 %s171, 0.2
    %s217 = sadd.f32 %s215, %s216
    %s218 = smul.f32 %s190, 0.5
    %s219 = sadd.f32 %s217, %s218
    %s220 = smul.f32 %s213, 0.3
    %s221 = sadd.f32 %s219, %s220
    %s222 = scalar_lea.smem [#allocation14], 0
    %223 = sst [smem:[%s222]] %s132
    %s224 = scalar_lea.smem [#allocation14], 1
    %225 = sst [smem:[%s224]] %s147
    %s226 = scalar_lea.smem [#allocation14], 2
    %227 = sst [smem:[%s226]] %s171
    %s228 = scalar_lea.smem [#allocation14], 3
    %229 = sst [smem:[%s228]] %s190
    %s230 = scalar_lea.smem [#allocation14], 4
    %231 = sst [smem:[%s230]] %s213
    %s232 = scalar_lea.smem [#allocation14], 5
    %233 = sst [smem:[%s232]] %s221
    %s234 = scalar_lea.smem [#allocation14], 6
    %235 = sst [smem:[%s234]] 0.0
    %s236 = scalar_lea.smem [#allocation14], 7
    %237 = sst [smem:[%s236]] 0.0
    // Predicated region
    $region62: #{tpu_custom_call.1} parent=1 // pred_check
      _
    $region63: #{tpu_custom_call.1} parent=1 // pred_check_branch
      %239 = sbr.rel (0) target = $region65
    $region64: #{tpu_custom_call.1} parent=1 // pred_region
      %s241 = ssub.s32 16, 16
      %242 = vsyncadd [#allocation4], %s241
      %245 = dma.smem_to_hbm [#allocation14], 16, %s8, [#allocation4]
    $region65: #{tpu_custom_call.1} parent=1 // pred_fallthru
      _
    // Predicated region
    $region66: #{tpu_custom_call.1} parent=1 // pred_check
      _
    $region67: #{tpu_custom_call.1} parent=1 // pred_check_branch
      %247 = sbr.rel (0) target = $region69
    $region68: #{tpu_custom_call.1} parent=1 // pred_region
      %248 = dma.done [#allocation4], 16
    $region69: #{tpu_custom_call.1} parent=1 // pred_fallthru
      _
    %249 = sfence
    %250 = vsyncpa [#allocation3], 1
    %251 = vsyncpa [#allocation6], 1
    %252 = vsyncpa [#allocation9], 1
    %253 = vsyncpa [#allocation12], 1
    %254 = vsyncpa [#allocation4], 1

</llo_original>
